<compile_context>
chip_gen: v6e
topology: v6e:2x2x1
jax: 0.10.0
libtpu: 0.0.40
codegen_flags: <defaults>
</compile_context>

<pallas_src>
import functools

import jax
import jax.numpy as jnp
from jax.experimental import pallas as pl
from jax.experimental.pallas import tpu as pltpu


def _round_up(v, m):
    return (v + m - 1) // m * m


def cnn_layer_kernel(x_ref, w_ref, b_ref, gamma_ref, beta_ref, o_ref,
                     *, L, M, conv_pad, eps, matmul_dtype):
    """One Cout block.

    x_ref     : (Cin, M_pad)        channel-major activations, lane = n*L + l
    w_ref     : (K, Cout_blk, Cin)  conv taps for this channel block
    b_ref     : (Cout_blk, 1)       conv bias
    gamma_ref : (Cout_blk, 1)       BN weight
    beta_ref  : (Cout_blk, 1)       BN bias
    o_ref     : (Cout_blk, M_pad)
    """
    _, M_pad = x_ref.shape
    K = w_ref.shape[0]
    offsets = tuple(range(-conv_pad, -conv_pad + K))   # same taps for conv & pool

    x = x_ref[...]
    if x.dtype != matmul_dtype:
        x = x.astype(matmul_dtype)

    # Lane bookkeeping: one (1, M_pad) iota; tap-validity masks computed once
    # and reused by both the conv and the pool loops.
    lane = jax.lax.broadcasted_iota(jnp.int32, (1, M_pad), 1)
    l_pos = lane % L
    tap_mask = {d: (l_pos + d >= 0) & (l_pos + d < L)
                for d in offsets if d != 0}
    x_zero = jnp.zeros((), x.dtype)
    f_zero = jnp.zeros((), jnp.float32)

    # ---- Conv1d (stride=1, groups=1, dilation=1): K accumulated matmuls over
    #      lane-rolled views of x; masked lanes reproduce the zero padding.
    conv = None
    for k, d in enumerate(offsets):
        if d == 0:
            xs = x                                        # center tap always valid
        else:
            xs = pltpu.roll(x, shift=(-d) % M_pad, axis=1)
            xs = jnp.where(tap_mask[d], xs, x_zero)
        w_k = w_ref[k]                                    # (Cout_blk, Cin)
        if w_k.dtype != matmul_dtype:
            w_k = w_k.astype(matmul_dtype)
        c = jnp.dot(w_k, xs, preferred_element_type=jnp.float32)
        conv = c if conv is None else conv + c
    conv = conv + b_ref[...]

    # ---- ReLU
    act = jnp.maximum(conv, f_zero)

    # ---- MaxPool1d(kernel=K, stride=1, padding=conv_pad)
    #      act >= 0 (post-ReLU) and the center tap is always in range, so
    #      masking out-of-range taps to 0 is equivalent to PyTorch's -inf pad.
    pooled = act
    for d in offsets:
        if d == 0:
            continue
        rolled = pltpu.roll(act, shift=(-d) % M_pad, axis=1)
        pooled = jnp.maximum(pooled, jnp.where(tap_mask[d], rolled, f_zero))

    if M_pad != M:
        # Zero the lane padding so it does not pollute the batch statistics.
        pooled = jnp.where(lane < M, pooled, f_zero)

    # ---- BatchNorm1d training-mode forward: per-channel biased batch stats
    #      over N*L, fused single pass (sum and sum-of-squares).
    inv_m = jnp.float32(1.0 / M)
    mean = jnp.sum(pooled, axis=1, keepdims=True) * inv_m            # (Cout_blk, 1)
    ex2 = jnp.sum(pooled * pooled, axis=1, keepdims=True) * inv_m
    var = ex2 - mean * mean
    inv_std = jax.lax.rsqrt(var + jnp.float32(eps))
    scale = gamma_ref[...] * inv_std
    shift = beta_ref[...] - mean * scale

    # ---- Dropout(p=0.0) is the identity.
    o_ref[...] = (pooled * scale + shift).astype(o_ref.dtype)


def _vmem_estimate(cin, cout_block, k, m_pad):
    f32 = 4
    x_b = cin * m_pad * f32
    w_b = k * cout_block * cin * f32
    col_b = 3 * cout_block * f32
    out_b = cout_block * m_pad * f32
    live_tiles = 6 * max(cin, cout_block) * m_pad * f32   # in-kernel temporaries
    est = 2 * (x_b + w_b + col_b + out_b) + live_tiles     # 2x = double buffering
    return int(min(max(2 * est, 8 << 20), 64 << 20))


def cnn_layer_forward(x, W, b, gamma, beta, *, kernel_size, eps=1e-5,
                      cout_block=None, matmul_dtype=jnp.float32):
    """x: (N, Cin, L) f32 -> (N, Cout, L) f32.  Module defaults: odd kernel,
    padding=kernel_size//2, stride=1, groups=1, dilation=1, relu, BN, p=0."""
    N, Cin, L = x.shape
    Cout = W.shape[0]
    K = kernel_size
    assert W.shape == (Cout, Cin, K)
    assert K % 2 == 1, "padding=-1 path assumes odd kernel_size (stride=1)"
    pad = K // 2

    M = N * L
    M_pad = _round_up(max(M, 128), 128)         # lane-dense output blocks

    if cout_block is None:
        cout_block = min(128, _round_up(Cout, 8))
    cout_block = _round_up(cout_block, 8)
    Cout_pad = _round_up(Cout, cout_block)

    # ---- glue (plain JAX): channel-major activation layout + padding
    x2 = jnp.transpose(x, (1, 0, 2)).reshape(Cin, M).astype(jnp.float32)
    if M_pad != M:
        x2 = jnp.pad(x2, ((0, 0), (0, M_pad - M)))

    w_t = jnp.transpose(W, (2, 0, 1)).astype(jnp.float32)   # (K, Cout, Cin)
    if Cout_pad != Cout:
        cpad = Cout_pad - Cout
        w_t = jnp.pad(w_t, ((0, 0), (0, cpad), (0, 0)))
        b_p = jnp.pad(b, (0, cpad))
        g_p = jnp.pad(gamma, (0, cpad))
        be_p = jnp.pad(beta, (0, cpad))
    else:
        b_p, g_p, be_p = b, gamma, beta
    b2 = b_p.reshape(Cout_pad, 1).astype(jnp.float32)
    g2 = g_p.reshape(Cout_pad, 1).astype(jnp.float32)
    be2 = be_p.reshape(Cout_pad, 1).astype(jnp.float32)

    kern = functools.partial(cnn_layer_kernel, L=L, M=M, conv_pad=pad,
                             eps=eps, matmul_dtype=matmul_dtype)

    grid = (Cout_pad // cout_block,)
    out2 = pl.pallas_call(
        kern,
        out_shape=jax.ShapeDtypeStruct((Cout_pad, M_pad), jnp.float32),
        grid_spec=pltpu.PrefetchScalarGridSpec(
            num_scalar_prefetch=0,
            grid=grid,
            in_specs=[
                pl.BlockSpec((Cin, M_pad), lambda j: (0, 0)),          # x (shared)
                pl.BlockSpec((K, cout_block, Cin), lambda j: (0, j, 0)),
                pl.BlockSpec((cout_block, 1), lambda j: (j, 0)),       # bias
                pl.BlockSpec((cout_block, 1), lambda j: (j, 0)),       # gamma
                pl.BlockSpec((cout_block, 1), lambda j: (j, 0)),       # beta
            ],
            out_specs=pl.BlockSpec((cout_block, M_pad), lambda j: (j, 0)),
        ),
        compiler_params=pltpu.CompilerParams(
            dimension_semantics=("parallel",),
            vmem_limit_bytes=_vmem_estimate(Cin, cout_block, K, M_pad)),
    )(x2, w_t, b2, g2, be2)

    # back to PyTorch NCL layout (small glue; see TODO about lane-axis tiling)
    return out2[:Cout, :M].reshape(Cout, N, L).transpose(1, 0, 2)


def reference_forward(x, W, b, gamma, beta, *, kernel_size, eps=1e-5):
    """Pure-JAX reference mirroring the PyTorch forward (training mode)."""
    N, Cin, L = x.shape
    Cout, _, K = W.shape
    pad = K // 2
    x_pad = jnp.pad(x, ((0, 0), (0, 0), (pad, pad)))
    conv = jnp.zeros((N, Cout, L), jnp.float32)
    for k in range(K):
        conv = conv + jnp.einsum('oc,ncl->nol', W[:, :, k], x_pad[:, :, k:k + L])
    conv = conv + b[None, :, None]
    act = jnp.maximum(conv, 0.0)
    act_pad = jnp.pad(act, ((0, 0), (0, 0), (pad, pad)),
                      constant_values=-jnp.inf)
    pooled = jnp.max(jnp.stack([act_pad[:, :, k:k + L] for k in range(K)],
                               axis=0), axis=0)
    mean = pooled.mean(axis=(0, 2), keepdims=True)
    var = ((pooled - mean) ** 2).mean(axis=(0, 2), keepdims=True)
    out = (pooled - mean) / jnp.sqrt(var + eps)
    return out * gamma[None, :, None] + beta[None, :, None]


if __name__ == "__main__":
    base_key = jax.random.PRNGKey(0)

    def run_case(N, Cin, Cout, L, K, cout_block=None):
        ks = jax.random.split(jax.random.fold_in(base_key, N * 1000 + Cout * 10 + K), 3)
        x = jax.random.normal(ks[0], (N, Cin, L), dtype=jnp.float32)
        # init_module(..., init='normal'): deterministic synthetic normal init
        W = 0.1 * jax.random.normal(ks[1], (Cout, Cin, K), dtype=jnp.float32)
        b = 0.1 * jax.random.normal(ks[2], (Cout,), dtype=jnp.float32)
        gamma = jnp.ones((Cout,), jnp.float32)   # BatchNorm1d default affine init
        beta = jnp.zeros((Cout,), jnp.float32)

        out = cnn_layer_forward(x, W, b, gamma, beta, kernel_size=K,
                                cout_block=cout_block)
        out = jax.block_until_ready(out)
        ref = reference_forward(x, W, b, gamma, beta, kernel_size=K)
        assert out.shape == (N, Cout, L)
        err = jnp.max(jnp.abs(out - ref))
        assert jnp.allclose(out, ref, atol=2e-4, rtol=2e-4), f"max err {err}"

    run_case(2, 4, 8, 16, 3)                   # base CNNLayer shapes
    run_case(2, 4, 10, 16, 5, cout_block=8)    # 2-step grid + channel/lane padding
    print("KERNEL_OK")
</pallas_src>

<mosaic_0001>
module attributes {stable_mosaic.version = 11 : i64} {
  func.func @cnn_layer_kernel(%arg0: i32, %arg1: memref<4x128xf32, #tpu.memory_space<vmem>>, %arg2: memref<3x8x4xf32, #tpu.memory_space<vmem>>, %arg3: memref<8x1xf32, #tpu.memory_space<vmem>>, %arg4: memref<8x1xf32, #tpu.memory_space<vmem>>, %arg5: memref<8x1xf32, #tpu.memory_space<vmem>>, %arg6: memref<8x128xf32, #tpu.memory_space<vmem>>) attributes {dimension_semantics = [#tpu.dimension_semantics<parallel>], iteration_bounds = array<i64: 1>, scalar_prefetch = 0 : i64, scratch_operands = 0 : i64, tpu.core_type = #tpu.core_type<tc>, window_params = [{pipeline_mode = #tpu.pipeline_mode<synchronous>, transform_indices = @transform_0, window_bounds = array<i64: 4, 128>}, {transform_indices = @transform_1, window_bounds = array<i64: 3, 8, 4>}, {transform_indices = @transform_2, window_bounds = array<i64: 8, 1>}, {transform_indices = @transform_3, window_bounds = array<i64: 8, 1>}, {transform_indices = @transform_4, window_bounds = array<i64: 8, 1>}, {transform_indices = @transform_5, window_bounds = array<i64: 8, 128>}]} {
    %c0 = arith.constant 0 : index
    %c0_0 = arith.constant 0 : index
    %0 = vector.load %arg1[%c0, %c0_0] : memref<4x128xf32, #tpu.memory_space<vmem>>, vector<4x128xf32>
    %1 = tpu.iota {dimensions = array<i32: 1>} : vector<1x128xi32>
    %c16_i32 = arith.constant 16 : i32
    %c0_i32 = arith.constant 0 : i32
    %2 = arith.cmpi eq, %c16_i32, %c0_i32 : i32
    %c1_i32 = arith.constant 1 : i32
    %3 = arith.select %2, %c1_i32, %c16_i32 : i32
    %4 = vector.broadcast %3 : i32 to vector<1x128xi32>
    %5 = arith.remsi %1, %4 : vector<1x128xi32>
    %c0_i32_1 = arith.constant 0 : i32
    %6 = vector.broadcast %c0_i32_1 : i32 to vector<1x128xi32>
    %7 = arith.cmpi ne, %5, %6 : vector<1x128xi32>
    %c0_i32_2 = arith.constant 0 : i32
    %8 = vector.broadcast %c0_i32_2 : i32 to vector<1x128xi32>
    %9 = arith.cmpi slt, %5, %8 : vector<1x128xi32>
    %c0_i32_3 = arith.constant 0 : i32
    %10 = arith.cmpi slt, %3, %c0_i32_3 : i32
    %11 = vector.broadcast %10 : i1 to vector<1x128xi1>
    %12 = vector.broadcast %11 : vector<1x128xi1> to vector<1x128xi1>
    %13 = arith.xori %9, %12 : vector<1x128xi1>
    %14 = arith.andi %13, %7 : vector<1x128xi1>
    %15 = vector.broadcast %3 : i32 to vector<1x128xi32>
    %16 = arith.addi %5, %15 : vector<1x128xi32>
    %17 = arith.select %14, %16, %5 : vector<1x128xi1>, vector<1x128xi32>
    %c-1_i32 = arith.constant -1 : i32
    %18 = vector.broadcast %c-1_i32 : i32 to vector<1x128xi32>
    %19 = arith.addi %17, %18 : vector<1x128xi32>
    %c0_i32_4 = arith.constant 0 : i32
    %20 = vector.broadcast %c0_i32_4 : i32 to vector<1x128xi32>
    %21 = arith.cmpi sge, %19, %20 : vector<1x128xi32>
    %c-1_i32_5 = arith.constant -1 : i32
    %22 = vector.broadcast %c-1_i32_5 : i32 to vector<1x128xi32>
    %23 = arith.addi %17, %22 : vector<1x128xi32>
    %c16_i32_6 = arith.constant 16 : i32
    %24 = vector.broadcast %c16_i32_6 : i32 to vector<1x128xi32>
    %25 = arith.cmpi slt, %23, %24 : vector<1x128xi32>
    %26 = arith.andi %21, %25 : vector<1x128xi1>
    %c1_i32_7 = arith.constant 1 : i32
    %27 = vector.broadcast %c1_i32_7 : i32 to vector<1x128xi32>
    %28 = arith.addi %17, %27 : vector<1x128xi32>
    %c0_i32_8 = arith.constant 0 : i32
    %29 = vector.broadcast %c0_i32_8 : i32 to vector<1x128xi32>
    %30 = arith.cmpi sge, %28, %29 : vector<1x128xi32>
    %c1_i32_9 = arith.constant 1 : i32
    %31 = vector.broadcast %c1_i32_9 : i32 to vector<1x128xi32>
    %32 = arith.addi %17, %31 : vector<1x128xi32>
    %c16_i32_10 = arith.constant 16 : i32
    %33 = vector.broadcast %c16_i32_10 : i32 to vector<1x128xi32>
    %34 = arith.cmpi slt, %32, %33 : vector<1x128xi32>
    %35 = arith.andi %30, %34 : vector<1x128xi1>
    %c1_i32_11 = arith.constant 1 : i32
    %36 = tpu.dynamic_rotate %0 by %c1_i32_11 dim 1 : vector<4x128xf32>, i32 -> vector<4x128xf32>
    %cst = arith.constant 0.000000e+00 : f32
    %37 = vector.shape_cast %26 : vector<1x128xi1> to vector<1x128xi1>
    %38 = vector.broadcast %37 : vector<1x128xi1> to vector<4x128xi1>
    %39 = vector.broadcast %cst : f32 to vector<4x128xf32>
    %40 = arith.select %38, %36, %39 : vector<4x128xi1>, vector<4x128xf32>
    %c0_12 = arith.constant 0 : index
    %c0_13 = arith.constant 0 : index
    %c0_14 = arith.constant 0 : index
    %41 = vector.load %arg2[%c0_12, %c0_13, %c0_14] : memref<3x8x4xf32, #tpu.memory_space<vmem>>, vector<1x8x4xf32>
    %42 = vector.shape_cast %41 : vector<1x8x4xf32> to vector<8x4xf32>
    %cst_15 = arith.constant dense<0.000000e+00> : vector<8x128xf32>
    %43 = tpu.matmul %42, %40, %cst_15 {dimension_numbers = #tpu.dot_dimension_numbers<[1], [0], [0], [1], [0, 0, 1, 1], [], []>} : vector<8x4xf32>, vector<4x128xf32>, vector<8x128xf32> -> vector<8x128xf32>
    %c1 = arith.constant 1 : index
    %c0_16 = arith.constant 0 : index
    %c0_17 = arith.constant 0 : index
    %44 = vector.load %arg2[%c1, %c0_16, %c0_17] : memref<3x8x4xf32, #tpu.memory_space<vmem>>, vector<1x8x4xf32>
    %45 = vector.shape_cast %44 : vector<1x8x4xf32> to vector<8x4xf32>
    %cst_18 = arith.constant dense<0.000000e+00> : vector<8x128xf32>
    %46 = tpu.matmul %45, %0, %cst_18 {dimension_numbers = #tpu.dot_dimension_numbers<[1], [0], [0], [1], [0, 0, 1, 1], [], []>} : vector<8x4xf32>, vector<4x128xf32>, vector<8x128xf32> -> vector<8x128xf32>
    %47 = arith.addf %43, %46 : vector<8x128xf32>
    %c127_i32 = arith.constant 127 : i32
    %48 = tpu.dynamic_rotate %0 by %c127_i32 dim 1 : vector<4x128xf32>, i32 -> vector<4x128xf32>
    %cst_19 = arith.constant 0.000000e+00 : f32
    %49 = vector.shape_cast %35 : vector<1x128xi1> to vector<1x128xi1>
    %50 = vector.broadcast %49 : vector<1x128xi1> to vector<4x128xi1>
    %51 = vector.broadcast %cst_19 : f32 to vector<4x128xf32>
    %52 = arith.select %50, %48, %51 : vector<4x128xi1>, vector<4x128xf32>
    %c2 = arith.constant 2 : index
    %c0_20 = arith.constant 0 : index
    %c0_21 = arith.constant 0 : index
    %53 = vector.load %arg2[%c2, %c0_20, %c0_21] : memref<3x8x4xf32, #tpu.memory_space<vmem>>, vector<1x8x4xf32>
    %54 = vector.shape_cast %53 : vector<1x8x4xf32> to vector<8x4xf32>
    %cst_22 = arith.constant dense<0.000000e+00> : vector<8x128xf32>
    %55 = tpu.matmul %54, %52, %cst_22 {dimension_numbers = #tpu.dot_dimension_numbers<[1], [0], [0], [1], [0, 0, 1, 1], [], []>} : vector<8x4xf32>, vector<4x128xf32>, vector<8x128xf32> -> vector<8x128xf32>
    %56 = arith.addf %47, %55 : vector<8x128xf32>
    %c0_23 = arith.constant 0 : index
    %c0_24 = arith.constant 0 : index
    %57 = vector.load %arg3[%c0_23, %c0_24] : memref<8x1xf32, #tpu.memory_space<vmem>>, vector<8x1xf32>
    %58 = vector.broadcast %57 : vector<8x1xf32> to vector<8x128xf32>
    %59 = arith.addf %56, %58 : vector<8x128xf32>
    %cst_25 = arith.constant 0.000000e+00 : f32
    %60 = vector.broadcast %cst_25 : f32 to vector<8x128xf32>
    %61 = arith.maximumf %59, %60 : vector<8x128xf32>
    %c1_i32_26 = arith.constant 1 : i32
    %62 = tpu.dynamic_rotate %61 by %c1_i32_26 dim 1 : vector<8x128xf32>, i32 -> vector<8x128xf32>
    %cst_27 = arith.constant 0.000000e+00 : f32
    %63 = vector.shape_cast %26 : vector<1x128xi1> to vector<1x128xi1>
    %64 = vector.broadcast %63 : vector<1x128xi1> to vector<8x128xi1>
    %65 = vector.broadcast %cst_27 : f32 to vector<8x128xf32>
    %66 = arith.select %64, %62, %65 : vector<8x128xi1>, vector<8x128xf32>
    %67 = arith.maximumf %61, %66 : vector<8x128xf32>
    %c127_i32_28 = arith.constant 127 : i32
    %68 = tpu.dynamic_rotate %61 by %c127_i32_28 dim 1 : vector<8x128xf32>, i32 -> vector<8x128xf32>
    %cst_29 = arith.constant 0.000000e+00 : f32
    %69 = vector.shape_cast %35 : vector<1x128xi1> to vector<1x128xi1>
    %70 = vector.broadcast %69 : vector<1x128xi1> to vector<8x128xi1>
    %71 = vector.broadcast %cst_29 : f32 to vector<8x128xf32>
    %72 = arith.select %70, %68, %71 : vector<8x128xi1>, vector<8x128xf32>
    %73 = arith.maximumf %67, %72 : vector<8x128xf32>
    %c32_i32 = arith.constant 32 : i32
    %74 = vector.broadcast %c32_i32 : i32 to vector<1x128xi32>
    %75 = arith.cmpi slt, %1, %74 : vector<1x128xi32>
    %cst_30 = arith.constant 0.000000e+00 : f32
    %76 = vector.shape_cast %75 : vector<1x128xi1> to vector<1x128xi1>
    %77 = vector.broadcast %76 : vector<1x128xi1> to vector<8x128xi1>
    %78 = vector.broadcast %cst_30 : f32 to vector<8x128xf32>
    %79 = arith.select %77, %73, %78 : vector<8x128xi1>, vector<8x128xf32>
    %cst_31 = arith.constant dense<0.000000e+00> : vector<8xf32>
    %80 = vector.multi_reduction <add>, %79, %cst_31 [1] : vector<8x128xf32> to vector<8xf32>
    %81 = vector.shape_cast %80 : vector<8xf32> to vector<8x1xf32>
    %cst_32 = arith.constant 3.125000e-02 : f32
    %82 = vector.broadcast %cst_32 : f32 to vector<8x1xf32>
    %83 = arith.mulf %81, %82 : vector<8x1xf32>
    %84 = arith.mulf %79, %79 : vector<8x128xf32>
    %cst_33 = arith.constant dense<0.000000e+00> : vector<8xf32>
    %85 = vector.multi_reduction <add>, %84, %cst_33 [1] : vector<8x128xf32> to vector<8xf32>
    %86 = vector.shape_cast %85 : vector<8xf32> to vector<8x1xf32>
    %cst_34 = arith.constant 3.125000e-02 : f32
    %87 = vector.broadcast %cst_34 : f32 to vector<8x1xf32>
    %88 = arith.mulf %86, %87 : vector<8x1xf32>
    %89 = arith.mulf %83, %83 : vector<8x1xf32>
    %90 = arith.subf %88, %89 : vector<8x1xf32>
    %cst_35 = arith.constant 9.99999974E-6 : f32
    %91 = vector.broadcast %cst_35 : f32 to vector<8x1xf32>
    %92 = arith.addf %90, %91 : vector<8x1xf32>
    %93 = math.rsqrt %92 : vector<8x1xf32>
    %c0_36 = arith.constant 0 : index
    %c0_37 = arith.constant 0 : index
    %94 = vector.load %arg4[%c0_36, %c0_37] : memref<8x1xf32, #tpu.memory_space<vmem>>, vector<8x1xf32>
    %95 = arith.mulf %94, %93 : vector<8x1xf32>
    %c0_38 = arith.constant 0 : index
    %c0_39 = arith.constant 0 : index
    %96 = vector.load %arg5[%c0_38, %c0_39] : memref<8x1xf32, #tpu.memory_space<vmem>>, vector<8x1xf32>
    %97 = arith.mulf %83, %95 : vector<8x1xf32>
    %98 = arith.subf %96, %97 : vector<8x1xf32>
    %99 = vector.broadcast %95 : vector<8x1xf32> to vector<8x128xf32>
    %100 = arith.mulf %79, %99 : vector<8x128xf32>
    %101 = vector.broadcast %98 : vector<8x1xf32> to vector<8x128xf32>
    %102 = arith.addf %100, %101 : vector<8x128xf32>
    %c0_40 = arith.constant 0 : index
    %c0_41 = arith.constant 0 : index
    %103 = vector.load %arg6[%c0_40, %c0_41] : memref<8x128xf32, #tpu.memory_space<vmem>>, vector<8x128xf32>
    tpu.vector_store %arg6[%c0_40, %c0_41], %102 {strides = array<i32>} : memref<8x128xf32, #tpu.memory_space<vmem>>, vector<8x128xf32>,
    return
  }
  func.func @transform_0(%arg0: i32) -> (i32, i32) {
    %c0_i32 = arith.constant 0 : i32
    %c0_i32_0 = arith.constant 0 : i32
    %c0_i32_1 = arith.constant 0 : i32
    return %c0_i32, %c0_i32_0 : i32, i32
  }
  func.func @transform_1(%arg0: i32) -> (i32, i32, i32) {
    %c0_i32 = arith.constant 0 : i32
    %c0_i32_0 = arith.constant 0 : i32
    %c0_i32_1 = arith.constant 0 : i32
    return %c0_i32, %arg0, %c0_i32_0 : i32, i32, i32
  }
  func.func @transform_2(%arg0: i32) -> (i32, i32) {
    %c0_i32 = arith.constant 0 : i32
    %c0_i32_0 = arith.constant 0 : i32
    return %arg0, %c0_i32 : i32, i32
  }
  func.func @transform_3(%arg0: i32) -> (i32, i32) {
    %c0_i32 = arith.constant 0 : i32
    %c0_i32_0 = arith.constant 0 : i32
    return %arg0, %c0_i32 : i32, i32
  }
  func.func @transform_4(%arg0: i32) -> (i32, i32) {
    %c0_i32 = arith.constant 0 : i32
    %c0_i32_0 = arith.constant 0 : i32
    return %arg0, %c0_i32 : i32, i32
  }
  func.func @transform_5(%arg0: i32) -> (i32, i32) {
    %c0_i32 = arith.constant 0 : i32
    %c0_i32_0 = arith.constant 0 : i32
    return %arg0, %c0_i32 : i32, i32
  }
}

</mosaic_0001>

<llo_original>
// kernel: tpu_custom_call.1
$region0: #{tpu_custom_call.1}
  #allocation0 [shape = 'u32[]', space=smem, size = 0x4, offset = 0x4, fixed_abs, tag = 'smem constant byte address 0x4 - core index']
  #allocation1 [shape = 'u32[144,128]{1,0:T(1,128)}', space=vmem, size = 0x12000, scoped, tag = 'internal scratch']
  %s0 = inlined_call_operand.vmem [shape: f32[4,128], index: 0, kind: input, shape index: {}]
  %s1 = inlined_call_operand.vmem [shape: f32[3,8,4], index: 1, kind: input, shape index: {}]
  %s2 = inlined_call_operand.vmem [shape: f32[8,1], index: 2, kind: input, shape index: {}]
  %s3 = inlined_call_operand.vmem [shape: f32[8,1], index: 3, kind: input, shape index: {}]
  %s4 = inlined_call_operand.vmem [shape: f32[8,1], index: 4, kind: input, shape index: {}]
  %s5 = inlined_call_operand.hbm [shape: f32[8,128], index: 5, kind: output, shape index: {}]
  %s6 = sld [smem:[#allocation0]]
  $region30: #{tpu_custom_call.1} parent=0
    _
  %s8 = ssub.s32 1, %s6
  %s9 = scalar_select 0, %s8, %s6
  $region1: #{tpu_custom_call.1} parent=0
    #allocation2 [shape = 'u8[4096]{0}', space=vmem, size = 0x1000, scoped, tag = 'output window, operand 0, single buffered']
    #allocation3 [shape = 's32[1]{0}', space=sflag, size = 0x4, scoped, tag = 'scoped memory for tpu_custom_call.1']
    %10 = vsyncpa [#allocation3], 0
    // Predicated region
    $region2: #{tpu_custom_call.1} parent=1 // pred_check
      _
    $region3: #{tpu_custom_call.1} parent=1 // pred_check_branch
      %12 = sbr.rel (0) target = $region5
    $region4: #{tpu_custom_call.1} parent=1 // pred_region
      _
    $region5: #{tpu_custom_call.1} parent=1 // pred_fallthru
      _
    // Predicated region
    $region6: #{tpu_custom_call.1} parent=1 // pred_check
      _
    $region7: #{tpu_custom_call.1} parent=1 // pred_check_branch
      %14 = sbr.rel (0) target = $region9
    $region8: #{tpu_custom_call.1} parent=1 // pred_region
      _
    $region9: #{tpu_custom_call.1} parent=1 // pred_fallthru
      _
    // Predicated region
    $region10: #{tpu_custom_call.1} parent=1 // pred_check
      _
    $region11: #{tpu_custom_call.1} parent=1 // pred_check_branch
      %16 = sbr.rel (0) target = $region13
    $region12: #{tpu_custom_call.1} parent=1 // pred_region
      _
    $region13: #{tpu_custom_call.1} parent=1 // pred_fallthru
      _
    // Predicated region
    $region14: #{tpu_custom_call.1} parent=1 // pred_check
      _
    $region15: #{tpu_custom_call.1} parent=1 // pred_check_branch
      %18 = sbr.rel (0) target = $region17
    $region16: #{tpu_custom_call.1} parent=1 // pred_region
      _
    $region17: #{tpu_custom_call.1} parent=1 // pred_fallthru
      _
    // Predicated region
    $region18: #{tpu_custom_call.1} parent=1 // pred_check
      _
    $region19: #{tpu_custom_call.1} parent=1 // pred_check_branch
      %20 = sbr.rel (0) target = $region21
    $region20: #{tpu_custom_call.1} parent=1 // pred_region
      _
    $region21: #{tpu_custom_call.1} parent=1 // pred_fallthru
      _
    %v21 = vld [vmem:[%s0] sm:$0xf]
    %v22 = vlaneseq
    %v23 = vand.u32 %v22, 127
    %vm24 = vcmp.lt.s32.totalorder %v23, 0
    %v25 = vsub.s32 0, %v23
    %v26 = vsel %vm24, %v25, %v23
    %v27 = vshrl.u32 %v26, 4
    %v28 = vand.u32 %v26, 15
    %v29 = vsub.s32 0, %v28
    %v30 = vsel %vm24, %v29, %v28
    %vm31 = vcmp.ne.s32.totalorder %v30, 0
    %vm32 = vcmp.lt.s32.totalorder %v30, 0
    %vm33 = vmand %vm32, %vm31
    %v34 = vadd.s32 %v30, 16
    %v35 = vsel %vm33, %v34, %v30
    %v36 = vadd.s32 %v35, 4294967295
    %vm37 = vcmp.ge.s32.totalorder %v36, 0
    %vm38 = vcmp.lt.s32.totalorder %v36, 16
    %vm39 = vmand %vm37, %vm38
    %v40 = vadd.s32 %v35, 1
    %vm41 = vcmp.ge.s32.totalorder %v40, 0
    %vm42 = vcmp.lt.s32.totalorder %v40, 16
    %vm43 = vmand %vm41, %vm42
    %44 = vrot.lane.b32.xlu0 %v21, 1
    %v45 = vpop.permute.xlu0 %44
    %v46 = vsel %vm39, 1, 0
    %vm47 = vcmp.eq.s32.totalorder %v46, 1
    %v48 = vsel %vm47, %v45, 0.0
    %v49 = vld [vmem:[%s1] sm:$0xff]
    %s50 = scalar_lea.vmem %s1, 8
    %v51 = vld [vmem:[%s50] sm:$0xff]
    %vm52 = vcmask 31744
    %v54 = vsel %vm52, %v51, 0
    %vm56 = vcmask 1043456
    %v58 = vsel %vm56, %v21, 0
    %60 = vmatprep.subr.mxu0 0.0
    %61 = vmatpush1.msra.mxu0 0.0
    %62 = vmatprep.subr.mxu0 0.0
    %63 = vmatpush1.msra.mxu0 0.0
    %64 = vmatprep.subr.mxu0 0.0
    %65 = vmatpush1.msra.mxu0 0.0
    %66 = vmatprep.subr.mxu0 0.0
    %67 = vmatpush1.msra.mxu0 0.0
    %68 = vmatprep.subr.mxu0 0.0
    %69 = vmatpush1.msra.mxu0 0.0
    %70 = vmatprep.subr.mxu0 0.0
    %71 = vmatpush1.msra.mxu0 0.0
    %72 = vmatprep.subr.mxu0 0.0
    %73 = vmatpush1.msra.mxu0 0.0
    %74 = vmatprep.subr.mxu0 0.0
    %75 = vmatpush1.msra.mxu0 0.0
    %76 = vmatprep.subr.mxu0 0.0
    %77 = vmatpush1.msra.mxu0 0.0
    %78 = vmatprep.subr.mxu0 0.0
    %79 = vmatpush1.msra.mxu0 0.0
    %80 = vmatprep.subr.mxu0 0.0
    %81 = vmatpush1.msra.mxu0 0.0
    %82 = vmatprep.subr.mxu0 0.0
    %83 = vmatpush1.msra.mxu0 0.0
    %84 = vmatprep.subr.mxu0 0.0
    %85 = vmatpush1.msra.mxu0 0.0
    %86 = vmatprep.subr.mxu0 0.0
    %87 = vmatpush1.msra.mxu0 0.0
    %88 = vmatprep.subr.mxu0 0.0
    %89 = vmatpush1.msra.mxu0 0.0
    %90 = vmatprep.subr.mxu0 0.0
    %91 = vmatpush1.msra.mxu0 %v58
    %92 = vmatprep.subr.mxu0 0.0
    %93 = vmatpush2.msra.mxu0 0.0
    %94 = vmatprep.subr.mxu0 0.0
    %95 = vmatpush2.msra.mxu0 0.0
    %96 = vmatprep.subr.mxu0 0.0
    %97 = vmatpush2.msra.mxu0 0.0
    %98 = vmatprep.subr.mxu0 0.0
    %99 = vmatpush2.msra.mxu0 0.0
    %100 = vmatprep.subr.mxu0 0.0
    %101 = vmatpush2.msra.mxu0 0.0
    %102 = vmatprep.subr.mxu0 0.0
    %103 = vmatpush2.msra.mxu0 0.0
    %104 = vmatprep.subr.mxu0 0.0
    %105 = vmatpush2.msra.mxu0 0.0
    %106 = vmatprep.subr.mxu0 0.0
    %107 = vmatpush2.msra.mxu0 0.0
    %108 = vmatprep.subr.mxu0 0.0
    %109 = vmatpush2.msra.mxu0 0.0
    %110 = vmatprep.subr.mxu0 0.0
    %111 = vmatpush2.msra.mxu0 0.0
    %112 = vmatprep.subr.mxu0 0.0
    %113 = vmatpush2.msra.mxu0 0.0
    %114 = vmatprep.subr.mxu0 0.0
    %115 = vmatpush2.msra.mxu0 0.0
    %116 = vmatprep.subr.mxu0 0.0
    %117 = vmatpush2.msra.mxu0 0.0
    %118 = vmatprep.subr.mxu0 0.0
    %119 = vmatpush2.msra.mxu0 0.0
    %120 = vmatprep.subr.mxu0 0.0
    %121 = vmatpush2.msra.mxu0 0.0
    %122 = vmatprep.subr.mxu0 0.0
    %123 = vmatpush2.msra.mxu0 0.0
    %124 = vmatprep.mubr.f32.mxu0 0.0
    %125 = vmatmul.mubr.f32.gmra.mxu0 %v54
    %v126 = vpop.f32.mrf.mxu0
    %v127 = vadd.f32 0.0, %v126
    %v128 = vpop.f32.mrf.mxu0
    %129 = vdwg.mxu0
    %v131 = vsel %vm52, %v49, 0
    %v134 = vsel %vm56, %v48, 0
    %136 = vmatprep.subr.mxu0 0.0
    %137 = vmatpush1.msra.mxu0 0.0
    %138 = vmatprep.subr.mxu0 0.0
    %139 = vmatpush1.msra.mxu0 0.0
    %140 = vmatprep.subr.mxu0 0.0
    %141 = vmatpush1.msra.mxu0 0.0
    %142 = vmatprep.subr.mxu0 0.0
    %143 = vmatpush1.msra.mxu0 0.0
    %144 = vmatprep.subr.mxu0 0.0
    %145 = vmatpush1.msra.mxu0 0.0
    %146 = vmatprep.subr.mxu0 0.0
    %147 = vmatpush1.msra.mxu0 0.0
    %148 = vmatprep.subr.mxu0 0.0
    %149 = vmatpush1.msra.mxu0 0.0
    %150 = vmatprep.subr.mxu0 0.0
    %151 = vmatpush1.msra.mxu0 0.0
    %152 = vmatprep.subr.mxu0 0.0
    %153 = vmatpush1.msra.mxu0 0.0
    %154 = vmatprep.subr.mxu0 0.0
    %155 = vmatpush1.msra.mxu0 0.0
    %156 = vmatprep.subr.mxu0 0.0
    %157 = vmatpush1.msra.mxu0 0.0
    %158 = vmatprep.subr.mxu0 0.0
    %159 = vmatpush1.msra.mxu0 0.0
    %160 = vmatprep.subr.mxu0 0.0
    %161 = vmatpush1.msra.mxu0 0.0
    %162 = vmatprep.subr.mxu0 0.0
    %163 = vmatpush1.msra.mxu0 0.0
    %164 = vmatprep.subr.mxu0 0.0
    %165 = vmatpush1.msra.mxu0 0.0
    %166 = vmatprep.subr.mxu0 0.0
    %167 = vmatpush1.msra.mxu0 %v134
    %168 = vmatprep.subr.mxu0 0.0
    %169 = vmatpush2.msra.mxu0 0.0
    %170 = vmatprep.subr.mxu0 0.0
    %171 = vmatpush2.msra.mxu0 0.0
    %172 = vmatprep.subr.mxu0 0.0
    %173 = vmatpush2.msra.mxu0 0.0
    %174 = vmatprep.subr.mxu0 0.0
    %175 = vmatpush2.msra.mxu0 0.0
    %176 = vmatprep.subr.mxu0 0.0
    %177 = vmatpush2.msra.mxu0 0.0
    %178 = vmatprep.subr.mxu0 0.0
    %179 = vmatpush2.msra.mxu0 0.0
    %180 = vmatprep.subr.mxu0 0.0
    %181 = vmatpush2.msra.mxu0 0.0
    %182 = vmatprep.subr.mxu0 0.0
    %183 = vmatpush2.msra.mxu0 0.0
    %184 = vmatprep.subr.mxu0 0.0
    %185 = vmatpush2.msra.mxu0 0.0
    %186 = vmatprep.subr.mxu0 0.0
    %187 = vmatpush2.msra.mxu0 0.0
    %188 = vmatprep.subr.mxu0 0.0
    %189 = vmatpush2.msra.mxu0 0.0
    %190 = vmatprep.subr.mxu0 0.0
    %191 = vmatpush2.msra.mxu0 0.0
    %192 = vmatprep.subr.mxu0 0.0
    %193 = vmatpush2.msra.mxu0 0.0
    %194 = vmatprep.subr.mxu0 0.0
    %195 = vmatpush2.msra.mxu0 0.0
    %196 = vmatprep.subr.mxu0 0.0
    %197 = vmatpush2.msra.mxu0 0.0
    %198 = vmatprep.subr.mxu0 0.0
    %199 = vmatpush2.msra.mxu0 0.0
    %200 = vmatprep.mubr.f32.mxu0 0.0
    %201 = vmatmul.mubr.f32.gmra.mxu0 %v131
    %v202 = vpop.f32.mrf.mxu0
    %v203 = vadd.f32 %v127, %v202
    %v204 = vpop.f32.mrf.mxu0
    %205 = vdwg.mxu0
    %206 = vrot.lane.b32.xlu0 %v21, 127
    %v207 = vpop.permute.xlu0 %206
    %v208 = vsel %vm43, 1, 0
    %vm209 = vcmp.eq.s32.totalorder %v208, 1
    %v210 = vsel %vm209, %v207, 0.0
    %s211 = scalar_lea.vmem %s1, 16
    %v212 = vld [vmem:[%s211] sm:$0xff]
    %v214 = vsel %vm52, %v212, 0
    %v217 = vsel %vm56, %v210, 0
    %219 = vmatprep.subr.mxu0 0.0
    %220 = vmatpush1.msra.mxu0 0.0
    %221 = vmatprep.subr.mxu0 0.0
    %222 = vmatpush1.msra.mxu0 0.0
    %223 = vmatprep.subr.mxu0 0.0
    %224 = vmatpush1.msra.mxu0 0.0
    %225 = vmatprep.subr.mxu0 0.0
    %226 = vmatpush1.msra.mxu0 0.0
    %227 = vmatprep.subr.mxu0 0.0
    %228 = vmatpush1.msra.mxu0 0.0
    %229 = vmatprep.subr.mxu0 0.0
    %230 = vmatpush1.msra.mxu0 0.0
    %231 = vmatprep.subr.mxu0 0.0
    %232 = vmatpush1.msra.mxu0 0.0
    %233 = vmatprep.subr.mxu0 0.0
    %234 = vmatpush1.msra.mxu0 0.0
    %235 = vmatprep.subr.mxu0 0.0
    %236 = vmatpush1.msra.mxu0 0.0
    %237 = vmatprep.subr.mxu0 0.0
    %238 = vmatpush1.msra.mxu0 0.0
    %239 = vmatprep.subr.mxu0 0.0
    %240 = vmatpush1.msra.mxu0 0.0
    %241 = vmatprep.subr.mxu0 0.0
    %242 = vmatpush1.msra.mxu0 0.0
    %243 = vmatprep.subr.mxu0 0.0
    %244 = vmatpush1.msra.mxu0 0.0
    %245 = vmatprep.subr.mxu0 0.0
    %246 = vmatpush1.msra.mxu0 0.0
    %247 = vmatprep.subr.mxu0 0.0
    %248 = vmatpush1.msra.mxu0 0.0
    %249 = vmatprep.subr.mxu0 0.0
    %250 = vmatpush1.msra.mxu0 %v217
    %251 = vmatprep.subr.mxu0 0.0
    %252 = vmatpush2.msra.mxu0 0.0
    %253 = vmatprep.subr.mxu0 0.0
    %254 = vmatpush2.msra.mxu0 0.0
    %255 = vmatprep.subr.mxu0 0.0
    %256 = vmatpush2.msra.mxu0 0.0
    %257 = vmatprep.subr.mxu0 0.0
    %258 = vmatpush2.msra.mxu0 0.0
    %259 = vmatprep.subr.mxu0 0.0
    %260 = vmatpush2.msra.mxu0 0.0
    %261 = vmatprep.subr.mxu0 0.0
    %262 = vmatpush2.msra.mxu0 0.0
    %263 = vmatprep.subr.mxu0 0.0
    %264 = vmatpush2.msra.mxu0 0.0
    %265 = vmatprep.subr.mxu0 0.0
    %266 = vmatpush2.msra.mxu0 0.0
    %267 = vmatprep.subr.mxu0 0.0
    %268 = vmatpush2.msra.mxu0 0.0
    %269 = vmatprep.subr.mxu0 0.0
    %270 = vmatpush2.msra.mxu0 0.0
    %271 = vmatprep.subr.mxu0 0.0
    %272 = vmatpush2.msra.mxu0 0.0
    %273 = vmatprep.subr.mxu0 0.0
    %274 = vmatpush2.msra.mxu0 0.0
    %275 = vmatprep.subr.mxu0 0.0
    %276 = vmatpush2.msra.mxu0 0.0
    %277 = vmatprep.subr.mxu0 0.0
    %278 = vmatpush2.msra.mxu0 0.0
    %279 = vmatprep.subr.mxu0 0.0
    %280 = vmatpush2.msra.mxu0 0.0
    %281 = vmatprep.subr.mxu0 0.0
    %282 = vmatpush2.msra.mxu0 0.0
    %283 = vmatprep.mubr.f32.mxu0 0.0
    %284 = vmatmul.mubr.f32.gmra.mxu0 %v214
    %v285 = vpop.f32.mrf.mxu0
    %v286 = vadd.f32 0.0, %v285
    %v287 = vpop.f32.mrf.mxu0
    %288 = vdwg.mxu0
    %v289 = vadd.f32 %v203, %v286
    %v290 = vld [vmem:[%s2] sm:$0xff]
    %292 = vset.pattern.permute.xlu0 0
    %293 = vperm.xlu0 %292, %v290
    %v294 = vpop.permute.xlu0 %293
    %v296 = vadd.f32 %v289, %v294
    %v297 = vmax.f32 %v296, 0.0
    %298 = vrot.lane.b32.xlu0 %v297, 1
    %v299 = vpop.permute.xlu0 %298
    %v300 = vsel %vm47, %v299, 0.0
    %v301 = vmax.f32 %v297, %v300
    %302 = vrot.lane.b32.xlu0 %v297, 127
    %v303 = vpop.permute.xlu0 %302
    %v304 = vsel %vm209, %v303, 0.0
    %v305 = vmax.f32 %v301, %v304
    %vm306 = vcmp.lt.s32.totalorder %v23, 32
    %v307 = vsel %vm306, 1, 0
    %vm308 = vcmp.eq.s32.totalorder %v307, 1
    %v309 = vsel %vm308, %v305, 0.0
    %310 = vadd.xlane.f32.xlu0 %v309
    %v311 = vpop.xlane.xlu0 %310
    %v312 = vmul.f32 %v311, 0.03125
    %v313 = vmul.f32 %v309, %v309
    %314 = vadd.xlane.f32.xlu0 %v313
    %v315 = vpop.xlane.xlu0 %314
    %v316 = vmul.f32 %v315, 0.03125
    %v317 = vmul.f32 %v312, %v312
    %v318 = vsub.f32 %v316, %v317
    %v319 = vadd.f32 %v318, 1e-05
    %v320 = vrsqrt.pop %v319
    %v321 = vld [vmem:[%s3] sm:$0xff]
    %v322 = vmul.f32 %v321, %v320
    %v323 = vld [vmem:[%s4] sm:$0xff]
    %v324 = vmul.f32 %v312, %v322
    %v325 = vsub.f32 %v323, %v324
    %327 = vset.pattern.permute.xlu0 0
    %328 = vperm.xlu0 %327, %v322
    %v329 = vpop.permute.xlu0 %328
    %v331 = vmul.f32 %v309, %v329
    %333 = vset.pattern.permute.xlu0 0
    %334 = vperm.xlu0 %333, %v325
    %v335 = vpop.permute.xlu0 %334
    %v337 = vadd.f32 %v331, %v335
    %338 = vst [vmem:[#allocation2] sm:$0xff] %v337
    // Predicated region
    $region22: #{tpu_custom_call.1} parent=1 // pred_check
      _
    $region23: #{tpu_custom_call.1} parent=1 // pred_check_branch
      %340 = sbr.rel (0) target = $region25
    $region24: #{tpu_custom_call.1} parent=1 // pred_region
      %s342 = ssub.s32 128, 128
      %343 = vsyncadd [#allocation3], %s342
      %s345 = sshll.u32 [#allocation2], 4
      %s346 = int_to_ptr.vmem [resolvable:$true] %s345
      %348 = dma.vmem_to_hbm [thread:$0]  %s346, 128, %s5, [#allocation3]
    $region25: #{tpu_custom_call.1} parent=1 // pred_fallthru
      _
    // Predicated region
    $region26: #{tpu_custom_call.1} parent=1 // pred_check
      _
    $region27: #{tpu_custom_call.1} parent=1 // pred_check_branch
      %350 = sbr.rel (0) target = $region29
    $region28: #{tpu_custom_call.1} parent=1 // pred_region
      %351 = dma.done [#allocation3], 128
    $region29: #{tpu_custom_call.1} parent=1 // pred_fallthru
      _
    %352 = vsyncpa [#allocation3], 1

</llo_original>
